<compile_context>
chip_gen: v7x
topology: tpu7x:2x2x1
jax: 0.10.0
libtpu: 0.0.40
codegen_flags: <defaults>
</compile_context>

<pallas_src>
import jax
import jax.numpy as jnp
from jax.experimental import pallas as pl
from jax.experimental.pallas import tpu as pltpu

EPS = 1e-9


def _cdiv(a: int, b: int) -> int:
    return -(-a // b)


def _vmem_budget():
    """Per-chip (target block bytes per input, vmem_limit_bytes or None)."""
    try:
        cap = int(pltpu.get_tpu_info().vmem_capacity_bytes)
    except Exception:
        cap = 0
    if cap >= 100 * 1024 * 1024:
        # v4 / v5e / v5p / v6e class: 128 MiB VMEM per TensorCore.
        # Bigger blocks; raise scoped VMEM above v5e's 16 MiB default.
        return 4 * 1024 * 1024, 64 * 1024 * 1024
    # v7x (64 MiB per TC) or unknown: conservative blocks, default scoped
    # limit comfortably fits 2 inputs x 2 buffers x 2 MiB + tiny accumulators.
    return 2 * 1024 * 1024, None


def _pick_layout(total, n, itemsize_max, sublane_mult, target_block_bytes):
    """Choose a (rows, cols) view, a (BR, BC) block, and the tiled axis (0/1)."""
    # Preferred: dense lane-aligned flat view, tiled along rows (contiguous DMAs).
    for lane in (2048, 1024, 512, 256, 128):
        if total % lane == 0 and total // lane >= 8:
            rows, cols = total // lane, lane
            br = target_block_bytes // (cols * itemsize_max)
            br = max(sublane_mult, (br // sublane_mult) * sublane_mult)
            if rows >= sublane_mult:
                br = min(br, (rows // sublane_mult) * sublane_mult)
            else:
                br = rows  # full-dim block (always a legal block shape)
            return (rows, cols), (br, cols), 0
    # Fallback: per-sample (N, features) view.
    rows, cols = n, total // n
    if cols <= 128 or total * itemsize_max <= target_block_bytes:
        return (rows, cols), (rows, cols), 0  # single whole block
    bc = target_block_bytes // (rows * itemsize_max)
    bc = max(128, (bc // 128) * 128)
    bc = min(bc, (cols // 128) * 128)
    return (rows, cols), (rows, bc), 1


def _make_kernel(rows, cols, br, bc, tile_axis, kc, acc_rows, may_mask):
    groups = br // acc_rows  # sublane-groups folded per step

    def kernel(x_ref, t_ref, acc_pt_ref, acc_pu_ref):
        c = pl.program_id(0)   # core-split ("parallel") axis
        k = pl.program_id(1)   # sequential reduction ("arbitrary") axis

        @pl.when(k == 0)
        def _init():
            acc_pt_ref[...] = jnp.zeros_like(acc_pt_ref)
            acc_pu_ref[...] = jnp.zeros_like(acc_pu_ref)

        x = x_ref[...].astype(jnp.float32)
        t = t_ref[...].astype(jnp.float32)
        # sigmoid as a single EUP op: sigmoid(x) = 0.5 * (tanh(x/2) + 1)
        p = 0.5 * (jnp.tanh(0.5 * x) + 1.0)

        pt = p * t   # sum -> intersection / 2
        pu = p + t   # sum -> union = sum(p) + sum(t)

        def fold(v):
            # (br, bc) -> (1, acc_rows, bc): sublane-group fold, pure VPU adds,
            # no cross-lane reduce, no relayout (splits exactly on vreg rows).
            if groups == 1:
                return v[None]
            return v.reshape(groups, acc_rows, bc).sum(axis=0)[None]

        def accumulate(ptv, puv):
            acc_pt_ref[...] += fold(ptv)
            acc_pu_ref[...] += fold(puv)

        if not may_mask:
            accumulate(pt, pu)
        else:
            g = c * kc + k  # logical (unclamped) block index along tiled axis
            if tile_axis == 0:
                start, limit, blk, ax = g * br, rows, br, 0
            else:
                start, limit, blk, ax = g * bc, cols, bc, 1
            in_bounds = start + blk <= limit

            @pl.when(in_bounds)
            def _accum_fast():
                accumulate(pt, pu)

            @pl.when(jnp.logical_not(in_bounds))
            def _accum_ragged():
                # Mask the ragged / phantom tail (OOB reads carry garbage).
                # Mask BOTH pt and pu (sigmoid(garbage) would corrupt the union).
                ids = jax.lax.broadcasted_iota(jnp.int32, (br, bc), ax) + start
                valid = ids < limit
                accumulate(jnp.where(valid, pt, 0.0), jnp.where(valid, pu, 0.0))

    return kernel


def dice_loss(logits: jax.Array, targets: jax.Array, *, eps: float = EPS) -> jax.Array:
    """Pallas implementation of DiceLoss.forward (scalar output)."""
    assert logits.shape == targets.shape
    n = logits.shape[0]
    total = logits.size

    itemsize_x = jnp.dtype(logits.dtype).itemsize
    itemsize_t = jnp.dtype(targets.dtype).itemsize
    itemsize_max = max(itemsize_x, itemsize_t)
    # Sublane multiple required by the narrowest input dtype (f32:8 bf16:16 i8:32).
    sublane_mult = max(8, 32 // max(1, min(itemsize_x, itemsize_t)))

    target_bytes, vmem_limit = _vmem_budget()
    (rows, cols), (br, bc), tile_axis = _pick_layout(
        total, n, itemsize_max, sublane_mult, target_bytes)

    # Free, contiguous reshapes: all reductions are global, so any contiguous
    # 2D view is equivalent to tensor.view(num, -1) + global sums.
    x2d = logits.reshape(rows, cols)
    t2d = targets.reshape(rows, cols)

    dim = rows if tile_axis == 0 else cols
    blk = br if tile_axis == 0 else bc
    nblocks = _cdiv(dim, blk)
    ncores = 2 if nblocks >= 2 else 1          # use both TCs on v7x
    kc = _cdiv(nblocks, ncores)
    may_mask = ncores * kc * blk > dim          # ragged tail or phantom blocks
    acc_rows = 8 if br % 8 == 0 else br

    def _block_index(c, k):
        g = c * kc + k
        if ncores * kc > nblocks:               # clamp phantom blocks in-bounds
            g = jnp.minimum(g, nblocks - 1)     # (their contribution is masked)
        return g

    if tile_axis == 0:
        in_map = lambda c, k: (_block_index(c, k), 0)
    else:
        in_map = lambda c, k: (0, _block_index(c, k))
    acc_map = lambda c, k: (c, 0, 0)            # per-core accumulator block

    kernel = _make_kernel(rows, cols, br, bc, tile_axis, kc, acc_rows, may_mask)

    acc_shape = jax.ShapeDtypeStruct((ncores, acc_rows, bc), jnp.float32)

    cp_kwargs = dict(dimension_semantics=("parallel", "arbitrary"))
    if vmem_limit is not None:
        cp_kwargs["vmem_limit_bytes"] = vmem_limit

    acc_pt, acc_pu = pl.pallas_call(
        kernel,
        out_shape=(acc_shape, acc_shape),
        grid_spec=pltpu.PrefetchScalarGridSpec(
            num_scalar_prefetch=0,
            grid=(ncores, kc),
            in_specs=[
                pl.BlockSpec((br, bc), in_map),
                pl.BlockSpec((br, bc), in_map),
            ],
            out_specs=[
                pl.BlockSpec((1, acc_rows, bc), acc_map),   # running sum of p*t
                pl.BlockSpec((1, acc_rows, bc), acc_map),   # running sum of p+t
            ],
        ),
        compiler_params=pltpu.CompilerParams(**cp_kwargs),
    )(x2d, t2d)

    # Tiny one-time cross-lane reduce + scalar dice math (negligible vs stream).
    s_pt = jnp.sum(acc_pt)
    s_pu = jnp.sum(acc_pu)
    dice = (2.0 * s_pt + eps) / s_pu
    return 1.0 - dice


def dice_loss_ref(logits: jax.Array, targets: jax.Array) -> jax.Array:
    """Pure-JAX reference matching the PyTorch module."""
    n = logits.shape[0]
    p = jax.nn.sigmoid(logits.astype(jnp.float32)).reshape(n, -1)
    t = targets.astype(jnp.float32).reshape(n, -1)
    intersection = 2.0 * jnp.sum(p * t)
    union = jnp.sum(p) + jnp.sum(t)
    return 1.0 - (intersection + EPS) / union


if __name__ == "__main__":
    key = jax.random.PRNGKey(0)
    k1, k2, k3, k4 = jax.random.split(key, 4)

    # Small segmentation-style input: N, C, H, W.
    logits = jax.random.normal(k1, (2, 4, 16, 16), dtype=jnp.float32)
    targets = (jax.random.uniform(k2, (2, 4, 16, 16)) > 0.5).astype(jnp.float32)

    loss = jax.block_until_ready(dice_loss(logits, targets))
    ref = jax.block_until_ready(dice_loss_ref(logits, targets))
    assert jnp.allclose(loss, ref, atol=1e-5, rtol=1e-5), (loss, ref)

    # bf16 targets (lossless for 0/1 masks): -25% HBM bytes on the target stream.
    loss_bf16 = jax.block_until_ready(dice_loss(logits, targets.astype(jnp.bfloat16)))
    assert jnp.allclose(loss_bf16, ref, atol=1e-5, rtol=1e-5), (loss_bf16, ref)

    # Odd, non-lane-aligned shape exercising the fallback (N, features) layout.
    logits2 = jax.random.normal(k3, (2, 3, 17, 19), dtype=jnp.float32)
    targets2 = (jax.random.uniform(k4, (2, 3, 17, 19)) > 0.5).astype(jnp.float32)
    loss2 = jax.block_until_ready(dice_loss(logits2, targets2))
    ref2 = jax.block_until_ready(dice_loss_ref(logits2, targets2))
    assert jnp.allclose(loss2, ref2, atol=1e-5, rtol=1e-5), (loss2, ref2)

    print("KERNEL_OK")
</pallas_src>

<mosaic_0001>
module attributes {stable_mosaic.version = 11 : i64} {
  func.func @kernel(%arg0: i32, %arg1: i32, %arg2: memref<8x256xf32, #tpu.memory_space<vmem>>, %arg3: memref<8x256xf32, #tpu.memory_space<vmem>>, %arg4: memref<1x8x256xf32, #tpu.memory_space<vmem>>, %arg5: memref<1x8x256xf32, #tpu.memory_space<vmem>>) attributes {dimension_semantics = [#tpu.dimension_semantics<parallel>, #tpu.dimension_semantics<arbitrary>], iteration_bounds = array<i64: 1, 1>, scalar_prefetch = 0 : i64, scratch_operands = 0 : i64, tpu.core_type = #tpu.core_type<tc>, window_params = [{transform_indices = @transform_0, window_bounds = array<i64: 8, 256>}, {transform_indices = @transform_1, window_bounds = array<i64: 8, 256>}, {transform_indices = @transform_2, window_bounds = array<i64: 1, 8, 256>}, {transform_indices = @transform_3, window_bounds = array<i64: 1, 8, 256>}]} {
    %c0_i32 = arith.constant 0 : i32
    %0 = arith.cmpi eq, %arg1, %c0_i32 : i32
    %1 = arith.extui %0 : i1 to i32
    %c0_i32_0 = arith.constant 0 : i32
    %2 = arith.cmpi ne, %1, %c0_i32_0 : i32
    scf.if %2 {
      %cst_18 = arith.constant 0.000000e+00 : f32
      %22 = vector.broadcast %cst_18 : f32 to vector<1x8x256xf32>
      %c0_19 = arith.constant 0 : index
      %c0_20 = arith.constant 0 : index
      %c0_21 = arith.constant 0 : index
      %23 = vector.load %arg4[%c0_19, %c0_20, %c0_21] : memref<1x8x256xf32, #tpu.memory_space<vmem>>, vector<1x8x256xf32>
      tpu.vector_store %arg4[%c0_19, %c0_20, %c0_21], %22 {strides = array<i32>} : memref<1x8x256xf32, #tpu.memory_space<vmem>>, vector<1x8x256xf32>,
      %cst_22 = arith.constant 0.000000e+00 : f32
      %24 = vector.broadcast %cst_22 : f32 to vector<1x8x256xf32>
      %c0_23 = arith.constant 0 : index
      %c0_24 = arith.constant 0 : index
      %c0_25 = arith.constant 0 : index
      %25 = vector.load %arg5[%c0_23, %c0_24, %c0_25] : memref<1x8x256xf32, #tpu.memory_space<vmem>>, vector<1x8x256xf32>
      tpu.vector_store %arg5[%c0_23, %c0_24, %c0_25], %24 {strides = array<i32>} : memref<1x8x256xf32, #tpu.memory_space<vmem>>, vector<1x8x256xf32>,
    } else {
    }
    %c0 = arith.constant 0 : index
    %c0_1 = arith.constant 0 : index
    %3 = vector.load %arg2[%c0, %c0_1] : memref<8x256xf32, #tpu.memory_space<vmem>>, vector<8x256xf32>
    %c0_2 = arith.constant 0 : index
    %c0_3 = arith.constant 0 : index
    %4 = vector.load %arg3[%c0_2, %c0_3] : memref<8x256xf32, #tpu.memory_space<vmem>>, vector<8x256xf32>
    %cst = arith.constant 5.000000e-01 : f32
    %5 = vector.broadcast %cst : f32 to vector<8x256xf32>
    %6 = arith.mulf %5, %3 : vector<8x256xf32>
    %7 = math.tanh %6 : vector<8x256xf32>
    %cst_4 = arith.constant 1.000000e+00 : f32
    %8 = vector.broadcast %cst_4 : f32 to vector<8x256xf32>
    %9 = arith.addf %7, %8 : vector<8x256xf32>
    %cst_5 = arith.constant 5.000000e-01 : f32
    %10 = vector.broadcast %cst_5 : f32 to vector<8x256xf32>
    %11 = arith.mulf %10, %9 : vector<8x256xf32>
    %12 = arith.mulf %11, %4 : vector<8x256xf32>
    %13 = arith.addf %11, %4 : vector<8x256xf32>
    %c0_6 = arith.constant 0 : index
    %c0_7 = arith.constant 0 : index
    %c0_8 = arith.constant 0 : index
    %14 = vector.load %arg4[%c0_6, %c0_7, %c0_8] : memref<1x8x256xf32, #tpu.memory_space<vmem>>, vector<1x8x256xf32>
    %15 = vector.shape_cast %12 : vector<8x256xf32> to vector<1x8x256xf32>
    %16 = arith.addf %14, %15 : vector<1x8x256xf32>
    %c0_9 = arith.constant 0 : index
    %c0_10 = arith.constant 0 : index
    %c0_11 = arith.constant 0 : index
    %17 = vector.load %arg4[%c0_9, %c0_10, %c0_11] : memref<1x8x256xf32, #tpu.memory_space<vmem>>, vector<1x8x256xf32>
    tpu.vector_store %arg4[%c0_9, %c0_10, %c0_11], %16 {strides = array<i32>} : memref<1x8x256xf32, #tpu.memory_space<vmem>>, vector<1x8x256xf32>,
    %c0_12 = arith.constant 0 : index
    %c0_13 = arith.constant 0 : index
    %c0_14 = arith.constant 0 : index
    %18 = vector.load %arg5[%c0_12, %c0_13, %c0_14] : memref<1x8x256xf32, #tpu.memory_space<vmem>>, vector<1x8x256xf32>
    %19 = vector.shape_cast %13 : vector<8x256xf32> to vector<1x8x256xf32>
    %20 = arith.addf %18, %19 : vector<1x8x256xf32>
    %c0_15 = arith.constant 0 : index
    %c0_16 = arith.constant 0 : index
    %c0_17 = arith.constant 0 : index
    %21 = vector.load %arg5[%c0_15, %c0_16, %c0_17] : memref<1x8x256xf32, #tpu.memory_space<vmem>>, vector<1x8x256xf32>
    tpu.vector_store %arg5[%c0_15, %c0_16, %c0_17], %20 {strides = array<i32>} : memref<1x8x256xf32, #tpu.memory_space<vmem>>, vector<1x8x256xf32>,
    return
  }
  func.func @transform_0(%arg0: i32, %arg1: i32) -> (i32, i32) {
    %c1_i32 = arith.constant 1 : i32
    %0 = arith.muli %arg0, %c1_i32 : i32
    %1 = arith.addi %0, %arg1 : i32
    %c0_i32 = arith.constant 0 : i32
    %c0_i32_0 = arith.constant 0 : i32
    return %1, %c0_i32 : i32, i32
  }
  func.func @transform_1(%arg0: i32, %arg1: i32) -> (i32, i32) {
    %c1_i32 = arith.constant 1 : i32
    %0 = arith.muli %arg0, %c1_i32 : i32
    %1 = arith.addi %0, %arg1 : i32
    %c0_i32 = arith.constant 0 : i32
    %c0_i32_0 = arith.constant 0 : i32
    return %1, %c0_i32 : i32, i32
  }
  func.func @transform_2(%arg0: i32, %arg1: i32) -> (i32, i32, i32) {
    %c0_i32 = arith.constant 0 : i32
    %c0_i32_0 = arith.constant 0 : i32
    %c0_i32_1 = arith.constant 0 : i32
    return %arg0, %c0_i32, %c0_i32_0 : i32, i32, i32
  }
  func.func @transform_3(%arg0: i32, %arg1: i32) -> (i32, i32, i32) {
    %c0_i32 = arith.constant 0 : i32
    %c0_i32_0 = arith.constant 0 : i32
    %c0_i32_1 = arith.constant 0 : i32
    return %arg0, %c0_i32, %c0_i32_0 : i32, i32, i32
  }
}

</mosaic_0001>

<llo_original>
// kernel: tpu_custom_call.1
$region0: #{tpu_custom_call.1}
  #allocation0 [shape = 'u32[]', space=smem, size = 0x4, offset = 0x4, fixed_abs, tag = 'smem constant byte address 0x4 - core index']
  #allocation1 [shape = 'u32[144,128]{1,0:T(1,128)}', space=vmem, size = 0x12000, scoped, tag = 'internal scratch']
  %s0 = inlined_call_operand.hbm [shape: f32[8,256], index: 0, kind: input, shape index: {}]
  %s1 = inlined_call_operand.hbm [shape: f32[8,256], index: 1, kind: input, shape index: {}]
  %s2 = inlined_call_operand.hbm [shape: f32[1,8,256], index: 2, kind: output, shape index: {0}]
  %s3 = inlined_call_operand.hbm [shape: f32[1,8,256], index: 3, kind: output, shape index: {1}]
  %4 = xla_tuple %s2, %s3
  %s5 = sld [smem:[#allocation0]]
  $region38: #{tpu_custom_call.1} parent=0
    _
  %s7 = ssub.s32 1, %s5
  %s8 = scalar_select 0, %s7, %s5
  $region1: #{tpu_custom_call.1} parent=0
    #allocation2 [shape = 'u8[8192]{0}', space=vmem, size = 0x2000, scoped, tag = 'input window, operand 0, single buffered']
    #allocation3 [shape = 's32[1]{0}', space=sflag, size = 0x4, scoped, tag = 'scoped memory for tpu_custom_call.1']
    #allocation4 [shape = 's32[1]{0}', space=sflag, size = 0x4, scoped, tag = 'scoped memory for tpu_custom_call.1']
    #allocation5 [shape = 'u8[8192]{0}', space=vmem, size = 0x2000, scoped, tag = 'input window, operand 1, single buffered']
    #allocation6 [shape = 's32[1]{0}', space=sflag, size = 0x4, scoped, tag = 'scoped memory for tpu_custom_call.1']
    #allocation7 [shape = 'u8[8192]{0}', space=vmem, size = 0x2000, scoped, tag = 'output window, operand 0, single buffered']
    #allocation8 [shape = 'u8[8192]{0}', space=vmem, size = 0x2000, scoped, tag = 'output window, operand 1, single buffered']
    #allocation9 [shape = 's32[1]{0}', space=sflag, size = 0x4, scoped, tag = 'scoped memory for tpu_custom_call.1']
    %9 = vsyncpa [#allocation3], 0
    %10 = vsyncpa [#allocation6], 0
    %11 = vsyncpa [#allocation4], 0
    %12 = vsyncpa [#allocation9], 0
    // Predicated region
    $region2: #{tpu_custom_call.1} parent=1 // pred_check
      _
    $region3: #{tpu_custom_call.1} parent=1 // pred_check_branch
      %14 = sbr.rel (0) target = $region5
    $region4: #{tpu_custom_call.1} parent=1 // pred_region
      %s15 = sadd.s32 0, 0
      %s17 = ssub.s32 256, 256
      %18 = vsyncadd [#allocation3], %s17
      %s19 = smul.addr %s15, 2
      %s20 = smul.addr %s19, 128
      %s21 = scalar_lea.hbm %s0, %s20
      %s23 = sshll.u32 [#allocation2], 4
      %s24 = int_to_ptr.vmem [resolvable:$true] %s23
      %26 = dma.hbm_to_vmem [thread:$0]  %s21, 256, %s24, [#allocation3]
    $region5: #{tpu_custom_call.1} parent=1 // pred_fallthru
      _
    // Predicated region
    $region6: #{tpu_custom_call.1} parent=1 // pred_check
      _
    $region7: #{tpu_custom_call.1} parent=1 // pred_check_branch
      %28 = sbr.rel (0) target = $region9
    $region8: #{tpu_custom_call.1} parent=1 // pred_region
      %s29 = sadd.s32 0, 0
      %s31 = ssub.s32 256, 256
      %32 = vsyncadd [#allocation6], %s31
      %s33 = smul.addr %s29, 2
      %s34 = smul.addr %s33, 128
      %s35 = scalar_lea.hbm %s1, %s34
      %s37 = sshll.u32 [#allocation5], 4
      %s38 = int_to_ptr.vmem [resolvable:$true] %s37
      %40 = dma.hbm_to_vmem [thread:$0]  %s35, 256, %s38, [#allocation6]
    $region9: #{tpu_custom_call.1} parent=1 // pred_fallthru
      _
    // Predicated region
    $region10: #{tpu_custom_call.1} parent=1 // pred_check
      _
    $region11: #{tpu_custom_call.1} parent=1 // pred_check_branch
      %42 = sbr.rel (0) target = $region13
    $region12: #{tpu_custom_call.1} parent=1 // pred_region
      %43 = dma.done [#allocation3], 256
    $region13: #{tpu_custom_call.1} parent=1 // pred_fallthru
      _
    // Predicated region
    $region14: #{tpu_custom_call.1} parent=1 // pred_check
      _
    $region15: #{tpu_custom_call.1} parent=1 // pred_check_branch
      %45 = sbr.rel (0) target = $region17
    $region16: #{tpu_custom_call.1} parent=1 // pred_region
      %46 = dma.done [#allocation6], 256
    $region17: #{tpu_custom_call.1} parent=1 // pred_fallthru
      _
    %s47 = sadd.s32 0, 0
    %s48 = sadd.s32 0, 0
    %p49 = scmp.eq.s32.totalorder 0, 0
    // Predicated region
    $region18: #{tpu_custom_call.1} parent=1 // pred_check
      %p50 = pneg %p49
    $region19: #{tpu_custom_call.1} parent=1 // pred_check_branch
      %52 = sbr.rel (%p50) target = $region21
    $region20: #{tpu_custom_call.1} parent=1 // pred_region
      %53 = vst [vmem:[#allocation7] sm:$0xff] 0.0
      %54 = vst [vmem:[#allocation7 + $0x8] sm:$0xff] 0.0
      %55 = vst [vmem:[#allocation8] sm:$0xff] 0.0
      %56 = vst [vmem:[#allocation8 + $0x8] sm:$0xff] 0.0
    $region21: #{tpu_custom_call.1} parent=1 // pred_fallthru
      _
    %v57 = vld [vmem:[#allocation2] sm:$0xff]
    %v58 = vld [vmem:[#allocation2 + $0x8] sm:$0xff]
    %v59 = vld [vmem:[#allocation5] sm:$0xff]
    %v60 = vld [vmem:[#allocation5 + $0x8] sm:$0xff]
    %v61 = vmul.f32 %v57, 0.5
    %v62 = vmul.f32 %v58, 0.5
    %v63 = vtanh.pop %v61
    %v64 = vtanh.pop %v62
    %v65 = vadd.f32 %v63, 1.0
    %v66 = vadd.f32 %v64, 1.0
    %v67 = vmul.f32 %v65, 0.5
    %v68 = vmul.f32 %v66, 0.5
    %v69 = vmul.f32 %v67, %v59
    %v70 = vmul.f32 %v68, %v60
    %v71 = vadd.f32 %v67, %v59
    %v72 = vadd.f32 %v68, %v60
    %v73 = vld [vmem:[#allocation7] sm:$0xff]
    %v74 = vld [vmem:[#allocation7 + $0x8] sm:$0xff]
    %v75 = vadd.f32 %v73, %v69
    %v76 = vadd.f32 %v74, %v70
    %77 = vst [vmem:[#allocation7] sm:$0xff] %v75
    %78 = vst [vmem:[#allocation7 + $0x8] sm:$0xff] %v76
    %v79 = vld [vmem:[#allocation8] sm:$0xff]
    %v80 = vld [vmem:[#allocation8 + $0x8] sm:$0xff]
    %v81 = vadd.f32 %v79, %v71
    %v82 = vadd.f32 %v80, %v72
    %83 = vst [vmem:[#allocation8] sm:$0xff] %v81
    %84 = vst [vmem:[#allocation8 + $0x8] sm:$0xff] %v82
    // Predicated region
    $region22: #{tpu_custom_call.1} parent=1 // pred_check
      _
    $region23: #{tpu_custom_call.1} parent=1 // pred_check_branch
      %86 = sbr.rel (0) target = $region25
    $region24: #{tpu_custom_call.1} parent=1 // pred_region
      %s88 = ssub.s32 256, 256
      %89 = vsyncadd [#allocation4], %s88
      %s91 = sshll.u32 [#allocation7], 4
      %s92 = int_to_ptr.vmem [resolvable:$true] %s91
      %94 = dma.vmem_to_hbm [thread:$0]  %s92, 256, %s2, [#allocation4]
    $region25: #{tpu_custom_call.1} parent=1 // pred_fallthru
      _
    // Predicated region
    $region26: #{tpu_custom_call.1} parent=1 // pred_check
      _
    $region27: #{tpu_custom_call.1} parent=1 // pred_check_branch
      %96 = sbr.rel (0) target = $region29
    $region28: #{tpu_custom_call.1} parent=1 // pred_region
      %s98 = ssub.s32 256, 256
      %99 = vsyncadd [#allocation9], %s98
      %s101 = sshll.u32 [#allocation8], 4
      %s102 = int_to_ptr.vmem [resolvable:$true] %s101
      %104 = dma.vmem_to_hbm [thread:$0]  %s102, 256, %s3, [#allocation9]
    $region29: #{tpu_custom_call.1} parent=1 // pred_fallthru
      _
    // Predicated region
    $region30: #{tpu_custom_call.1} parent=1 // pred_check
      _
    $region31: #{tpu_custom_call.1} parent=1 // pred_check_branch
      %106 = sbr.rel (0) target = $region33
    $region32: #{tpu_custom_call.1} parent=1 // pred_region
      %107 = dma.done [#allocation4], 256
    $region33: #{tpu_custom_call.1} parent=1 // pred_fallthru
      _
    // Predicated region
    $region34: #{tpu_custom_call.1} parent=1 // pred_check
      _
    $region35: #{tpu_custom_call.1} parent=1 // pred_check_branch
      %109 = sbr.rel (0) target = $region37
    $region36: #{tpu_custom_call.1} parent=1 // pred_region
      %110 = dma.done [#allocation9], 256
    $region37: #{tpu_custom_call.1} parent=1 // pred_fallthru
      _
    %111 = vsyncpa [#allocation3], 1
    %112 = vsyncpa [#allocation6], 1
    %113 = vsyncpa [#allocation4], 1
    %114 = vsyncpa [#allocation9], 1

</llo_original>
